<compile_context>
chip_gen: v5e
topology: v5e:2x2
jax: 0.10.0
libtpu: 0.0.40
codegen_flags: <defaults>
</compile_context>

<pallas_src>
import jax
import jax.numpy as jnp
from jax.experimental import pallas as pl
from jax.experimental.pallas import tpu as pltpu


def additive_attention_kernel(x_ref, wenc_t_ref, walign_ref, out_ref):
    # x_ref:      (S, TB, D) block of encoder_outputs in its ORIGINAL layout, f32
    # wenc_t_ref: (D, D)  W_enc^T, pre-transposed in the wrapper, bf16
    # walign_ref: (1, D)  alignment weight, f32
    # out_ref:    (TB, D) context-vector block, f32
    x = x_ref[...]                                   # (S, TB, D) f32
    s, tb, d = x.shape

    # Encoder Linear on the MXU: one (S*TB, D) @ (D, D) bf16 pass, f32 accumulate.
    # Merging the two leading dims keeps D on the lane axis (no data movement).
    x2d = x.reshape(s * tb, d)
    act = jnp.dot(
        x2d.astype(jnp.bfloat16),
        wenc_t_ref[...],
        preferred_element_type=jnp.float32,
    )                                                # (S*TB, D) f32
    act = jnp.tanh(act).reshape(s, tb, d)            # (S, TB, D) f32

    # Alignment Linear (D -> 1): VPU multiply + lane reduce instead of a
    # 1-output-lane MXU matvec.
    w_align = walign_ref[0, :]                       # (D,) f32
    scores = jnp.sum(act * w_align, axis=-1, keepdims=True)     # (S, TB, 1)

    # Softmax over the sequence axis (== dim=1 of the PyTorch (B, S, 1) scores).
    # Axis 0 here is the leading/unrolled dim -> cheap vreg accumulation.
    m = jnp.max(scores, axis=0, keepdims=True)                  # (1, TB, 1)
    e = jnp.exp(scores - m)                                     # (S, TB, 1)
    denom = jnp.sum(e, axis=0, keepdims=True)                   # (1, TB, 1)
    attn = e * pl.reciprocal(denom, approx=True)                # (S, TB, 1)

    # Context vectors: weighted sum over the sequence axis -> lane-dense (TB, D).
    ctx = jnp.sum(attn * x, axis=0)                             # (TB, D) f32
    out_ref[...] = ctx.astype(out_ref.dtype)


def additive_attention(encoder_outputs, w_enc, w_align, *, tb=8):
    """encoder_outputs: (seq_len, batch, dim) f32 -> context vectors (batch, dim).

    w_enc:   (D, D) PyTorch Linear weight (out_features x in_features), no bias.
    w_align: (1, D) PyTorch Linear weight, no bias.
    tb:      batch elements processed per grid step (multiple of 8).
    """
    S, B, D = encoder_outputs.shape

    # Pad batch to a multiple of tb. Zero-padded batch rows give zero context
    # vectors (softmax of all-zero scores is uniform; weighted sum of zeros is
    # zero), and are sliced off below — no masking needed.
    b_pad = ((B + tb - 1) // tb) * tb
    x = encoder_outputs
    if b_pad != B:
        x = jnp.pad(x, ((0, 0), (0, b_pad - B), (0, 0)))

    # Loop-invariant weight prep (one-time, outside the kernel): pre-transpose
    # W_enc so the kernel never transposes per step, and cast to bf16 to halve
    # its DMA bytes and hit the bf16 MXU rate. Elementwise math stays f32.
    w_enc_t = jnp.transpose(w_enc).astype(jnp.bfloat16)          # (D, D)
    w_align_f32 = w_align.astype(jnp.float32)                    # (1, D)

    grid = (b_pad // tb,)

    # VMEM budget: double-buffered x block + double-buffered out block +
    # resident weights, with margin; capped well under v7x's 64 MiB physical.
    block_bytes = 2 * S * tb * D * 4 + 2 * tb * D * 4 + D * D * 2 + D * 4
    vmem_limit = int(min(max(6 * block_bytes, 8 << 20), 32 << 20))

    out = pl.pallas_call(
        additive_attention_kernel,
        out_shape=jax.ShapeDtypeStruct((b_pad, D), encoder_outputs.dtype),
        grid_spec=pltpu.PrefetchScalarGridSpec(
            num_scalar_prefetch=0,
            grid=grid,
            in_specs=[
                # Consume the original (S, B, D) layout directly — no XLA transpose.
                pl.BlockSpec((S, tb, D), lambda b: (0, b, 0)),
                pl.BlockSpec((D, D), lambda b: (0, 0)),          # W_enc^T (full, bf16)
                pl.BlockSpec((1, D), lambda b: (0, 0)),          # w_align (full, f32)
            ],
            out_specs=pl.BlockSpec((tb, D), lambda b: (b, 0)),   # lane-dense (TB, D)
        ),
        compiler_params=pltpu.CompilerParams(
            dimension_semantics=("parallel",),
            vmem_limit_bytes=vmem_limit,
        ),
    )(x, w_enc_t, w_align_f32)

    return out[:B]


def additive_attention_ref(encoder_outputs, w_enc, w_align):
    """Pure-JAX reference mirroring the PyTorch forward exactly (f32 throughout)."""
    x = jnp.transpose(encoder_outputs, (1, 0, 2))               # (B, S, D)
    act = jnp.einsum("bsd,ed->bse", x, w_enc)                   # Linear: x @ W^T
    scores = jnp.einsum("bsd,od->bso", jnp.tanh(act), w_align)  # (B, S, 1)
    attn = jax.nn.softmax(scores, axis=1)                       # softmax over seq
    ctx = jnp.einsum("bsd,bso->bdo", x, attn)[..., 0]           # bmm + squeeze
    return ctx


if __name__ == "__main__":
    # Small but TPU-friendly shapes: S=8, B=16 (two grid steps at TB=8 so both
    # v7x TensorCores get work), D=128 (one full lane width).
    seq_len, batch, dim = 8, 16, 128

    key = jax.random.PRNGKey(0)
    k_x, k_w1, k_w2 = jax.random.split(key, 3)

    encoder_outputs = jax.random.normal(k_x, (seq_len, batch, dim), dtype=jnp.float32)
    # PyTorch Linear weight layout: (out_features, in_features).
    bound = 1.0 / float(dim) ** 0.5
    w_enc = jax.random.uniform(k_w1, (dim, dim), jnp.float32, -bound, bound)
    w_align = jax.random.uniform(k_w2, (1, dim), jnp.float32, -bound, bound)

    out = additive_attention(encoder_outputs, w_enc, w_align, tb=8)
    out = jax.block_until_ready(out)

    ref = additive_attention_ref(encoder_outputs, w_enc, w_align)
    assert out.shape == (batch, dim), out.shape
    # bf16 MXU inputs + approx reciprocal -> compare at bf16-level tolerance.
    max_err = float(jnp.max(jnp.abs(out - ref)))
    assert jnp.allclose(out, ref, atol=1e-2, rtol=1e-2), f"mismatch, max|err|={max_err}"

    print("KERNEL_OK")
</pallas_src>

<mosaic_0001>
module attributes {stable_mosaic.version = 11 : i64} {
  func.func @additive_attention_kernel(%arg0: i32, %arg1: memref<8x8x128xf32, #tpu.memory_space<vmem>>, %arg2: memref<128x128xbf16, #tpu.memory_space<vmem>>, %arg3: memref<1x128xf32, #tpu.memory_space<vmem>>, %arg4: memref<8x128xf32, #tpu.memory_space<vmem>>) attributes {dimension_semantics = [#tpu.dimension_semantics<parallel>], iteration_bounds = array<i64: 2>, scalar_prefetch = 0 : i64, scratch_operands = 0 : i64, tpu.core_type = #tpu.core_type<tc>, window_params = [{transform_indices = @transform_0, window_bounds = array<i64: 8, 8, 128>}, {pipeline_mode = #tpu.pipeline_mode<synchronous>, transform_indices = @transform_1, window_bounds = array<i64: 128, 128>}, {pipeline_mode = #tpu.pipeline_mode<synchronous>, transform_indices = @transform_2, window_bounds = array<i64: 1, 128>}, {transform_indices = @transform_3, window_bounds = array<i64: 8, 128>}]} {
    %c0 = arith.constant 0 : index
    %c0_0 = arith.constant 0 : index
    %c0_1 = arith.constant 0 : index
    %0 = vector.load %arg1[%c0, %c0_0, %c0_1] : memref<8x8x128xf32, #tpu.memory_space<vmem>>, vector<8x8x128xf32>
    %1 = vector.shape_cast %0 : vector<8x8x128xf32> to vector<64x128xf32>
    %2 = arith.truncf %1 : vector<64x128xf32> to vector<64x128xbf16>
    %c0_2 = arith.constant 0 : index
    %c0_3 = arith.constant 0 : index
    %3 = vector.load %arg2[%c0_2, %c0_3] : memref<128x128xbf16, #tpu.memory_space<vmem>>, vector<128x128xbf16>
    %cst = arith.constant dense<0.000000e+00> : vector<64x128xf32>
    %4 = tpu.matmul %2, %3, %cst {dimension_numbers = #tpu.dot_dimension_numbers<[1], [0], [0], [1], [0, 0, 1, 1], [], []>} : vector<64x128xbf16>, vector<128x128xbf16>, vector<64x128xf32> -> vector<64x128xf32>
    %5 = math.tanh %4 : vector<64x128xf32>
    %6 = vector.shape_cast %5 : vector<64x128xf32> to vector<8x8x128xf32>
    %c0_4 = arith.constant 0 : index
    %c0_5 = arith.constant 0 : index
    %7 = vector.load %arg3[%c0_4, %c0_5] : memref<1x128xf32, #tpu.memory_space<vmem>>, vector<1x128xf32>
    %8 = vector.shape_cast %7 : vector<1x128xf32> to vector<128xf32>
    %9 = vector.shape_cast %8 : vector<128xf32> to vector<1x1x128xf32>
    %10 = vector.broadcast %9 : vector<1x1x128xf32> to vector<8x8x128xf32>
    %11 = arith.mulf %6, %10 : vector<8x8x128xf32>
    %cst_6 = arith.constant dense<0.000000e+00> : vector<8x8xf32>
    %12 = vector.multi_reduction <add>, %11, %cst_6 [2] : vector<8x8x128xf32> to vector<8x8xf32>
    %13 = vector.shape_cast %12 : vector<8x8xf32> to vector<8x8x1xf32>
    %cst_7 = arith.constant dense<0xFF800000> : vector<8x1xf32>
    %14 = vector.multi_reduction <maximumf>, %13, %cst_7 [0] : vector<8x8x1xf32> to vector<8x1xf32>
    %15 = vector.shape_cast %14 : vector<8x1xf32> to vector<1x8x1xf32>
    %16 = vector.broadcast %15 : vector<1x8x1xf32> to vector<8x8x1xf32>
    %17 = arith.subf %13, %16 : vector<8x8x1xf32>
    %18 = math.exp %17 : vector<8x8x1xf32>
    %cst_8 = arith.constant dense<0.000000e+00> : vector<8x1xf32>
    %19 = vector.multi_reduction <add>, %18, %cst_8 [0] : vector<8x8x1xf32> to vector<8x1xf32>
    %20 = vector.shape_cast %19 : vector<8x1xf32> to vector<1x8x1xf32>
    %21 = tpu.reciprocal %20 {approx = true} : vector<1x8x1xf32> -> vector<1x8x1xf32>
    %22 = vector.broadcast %21 : vector<1x8x1xf32> to vector<8x8x1xf32>
    %23 = arith.mulf %18, %22 : vector<8x8x1xf32>
    %24 = vector.broadcast %23 : vector<8x8x1xf32> to vector<8x8x128xf32>
    %25 = arith.mulf %24, %0 : vector<8x8x128xf32>
    %cst_9 = arith.constant dense<0.000000e+00> : vector<8x128xf32>
    %26 = vector.multi_reduction <add>, %25, %cst_9 [0] : vector<8x8x128xf32> to vector<8x128xf32>
    %c0_10 = arith.constant 0 : index
    %c0_11 = arith.constant 0 : index
    %27 = vector.load %arg4[%c0_10, %c0_11] : memref<8x128xf32, #tpu.memory_space<vmem>>, vector<8x128xf32>
    tpu.vector_store %arg4[%c0_10, %c0_11], %26 {strides = array<i32>} : memref<8x128xf32, #tpu.memory_space<vmem>>, vector<8x128xf32>,
    return
  }
  func.func @transform_0(%arg0: i32) -> (i32, i32, i32) {
    %c0_i32 = arith.constant 0 : i32
    %c0_i32_0 = arith.constant 0 : i32
    %c0_i32_1 = arith.constant 0 : i32
    return %c0_i32, %arg0, %c0_i32_0 : i32, i32, i32
  }
  func.func @transform_1(%arg0: i32) -> (i32, i32) {
    %c0_i32 = arith.constant 0 : i32
    %c0_i32_0 = arith.constant 0 : i32
    %c0_i32_1 = arith.constant 0 : i32
    return %c0_i32, %c0_i32_0 : i32, i32
  }
  func.func @transform_2(%arg0: i32) -> (i32, i32) {
    %c0_i32 = arith.constant 0 : i32
    %c0_i32_0 = arith.constant 0 : i32
    %c0_i32_1 = arith.constant 0 : i32
    return %c0_i32, %c0_i32_0 : i32, i32
  }
  func.func @transform_3(%arg0: i32) -> (i32, i32) {
    %c0_i32 = arith.constant 0 : i32
    %c0_i32_0 = arith.constant 0 : i32
    return %arg0, %c0_i32 : i32, i32
  }
}

</mosaic_0001>

<llo_original>
// kernel: tpu_custom_call.1
$region0: #{tpu_custom_call.1}
  #allocation0 [shape = 'u32[]', space=smem, size = 0x4, offset = 0x4, fixed_abs, tag = 'smem constant byte address 0x4 - core index']
  #allocation1 [shape = 'u32[72,128]{1,0:T(1,128)}', space=vmem, size = 0x9000, scoped, tag = 'internal scratch']
  %s0 = inlined_call_operand.hbm [shape: f32[8,16,128], index: 0, kind: input, shape index: {}]
  %s1 = inlined_call_operand.hbm [shape: bf16[128,128], index: 1, kind: input, shape index: {}]
  %s2 = inlined_call_operand.vmem [shape: f32[1,128], index: 2, kind: input, shape index: {}]
  %s3 = inlined_call_operand.hbm [shape: f32[16,128], index: 3, kind: output, shape index: {}]
  %s4 = sld [smem:[#allocation0]]
  $region53: #{tpu_custom_call.1} parent=0
    _
  %s6 = ssub.s32 1, %s4
  %s7 = scalar_select 0, %s6, %s4
  $region1: #{tpu_custom_call.1} parent=0
    #allocation2 [shape = 'u8[65536]{0}', space=vmem, size = 0x10000, scoped, tag = 'input window, operand 0']
    #allocation3 [shape = 's32[2]{0}', space=sflag, size = 0x8, scoped, tag = 'scoped memory for tpu_custom_call.1']
    #allocation4 [shape = 's32[2]{0}', space=sflag, size = 0x8, scoped, tag = 'scoped memory for tpu_custom_call.1']
    #allocation5 [shape = 'u8[32768]{0}', space=vmem, size = 0x8000, scoped, tag = 'input window, operand 1, single buffered']
    #allocation6 [shape = 's32[1]{0}', space=sflag, size = 0x4, scoped, tag = 'scoped memory for tpu_custom_call.1']
    #allocation7 [shape = 'u8[8192]{0}', space=vmem, size = 0x2000, scoped, tag = 'output window, operand 0']
    %8 = vsyncpa [#allocation3], 0
    %s9 = scalar_lea.sflag [#allocation3], 1
    %10 = vsyncpa %s9, 0
    %11 = vsyncpa [#allocation6], 0
    %12 = vsyncpa [#allocation4], 0
    %s13 = scalar_lea.sflag [#allocation4], 1
    %14 = vsyncpa %s13, 0
    loop: start=0, step=1, limit=4
    $region2: #{tpu_custom_call.1} parent=1 // loop_pre_header
      _
    $region3: #{tpu_custom_call.1} parent=1 // loop_header
      %s16 = sphi 0, %s20
      %p17 = scmp.ge.s32.totalorder %s16, 4
      %s26 = sphi 0, %s28
      %s29 = sphi 0, %s26
      %s30 = sphi 0, %s29
      %s46 = sphi 0, %s30
      %s50 = sphi 0, %s50
      %s52 = sphi 0, %s50
      %s53 = sphi 0, %s52
      %s67 = sphi 0, %s53
      %s71 = sphi 0, %s71
      %s73 = sphi 0, %s71
      %s74 = sphi 0, %s73
      %s88 = sphi 0, %s74
      %s94 = sphi 0, %s96
      %s97 = sphi 0, %s94
      %s98 = sphi 0, %s97
      %s114 = sphi 0, %s98
    $region4: #{tpu_custom_call.1} parent=1 // loop_header_branch
      %19 = sbr.rel (%p17) target = $region8
    $region5: #{tpu_custom_call.1} parent=1 // loop_body
      %s21 = ssub.s32 %s16, 1
      %s22 = ssub.s32 %s16, 2
      %s23 = sadd.s32 %s16, 1
      %s24 = ssub.s32 %s16, %s23
      %p25 = scmp.eq.s32.totalorder %s24, 0
      %s27 = sadd.s32 %s26, 1
      %s28 = scalar_select %p25, %s26, %s27
      %p31 = pneg %p25
      %p32 = scmp.eq.s32.totalorder %s16, 1
      %p33 = por %p31, %p32
      %p34 = scmp.ne.s32.totalorder %s26, %s29
      %p35 = scmp.eq.s32.totalorder %s16, 0
      %p36 = por %p34, %p35
      %p37 = scmp.ne.s32.totalorder %s26, %s29
      %p38 = scmp.eq.s32.totalorder %s21, 1
      %p39 = por %p37, %p38
      %p40 = scmp.ne.s32.totalorder %s29, %s30
      %p41 = scmp.eq.s32.totalorder %s21, 0
      %p42 = por %p40, %p41
      %p43 = scmp.ne.s32.totalorder %s29, %s30
      %p44 = scmp.eq.s32.totalorder %s22, 1
      %p45 = por %p43, %p44
      %p47 = scmp.ne.s32.totalorder %s30, %s46
      %p48 = scmp.eq.s32.totalorder %s22, 0
      %p49 = por %p47, %p48
      %s51 = sadd.s32 %s50, 1
      %p54 = scmp.eq.s32.totalorder %s16, 1
      %p55 = scmp.ne.s32.totalorder %s50, %s52
      %p56 = scmp.eq.s32.totalorder %s16, 0
      %p57 = por %p55, %p56
      %p58 = scmp.ne.s32.totalorder %s50, %s52
      %p59 = scmp.eq.s32.totalorder %s21, 1
      %p60 = por %p58, %p59
      %p61 = scmp.ne.s32.totalorder %s52, %s53
      %p62 = scmp.eq.s32.totalorder %s21, 0
      %p63 = por %p61, %p62
      %p64 = scmp.ne.s32.totalorder %s52, %s53
      %p65 = scmp.eq.s32.totalorder %s22, 1
      %p66 = por %p64, %p65
      %p68 = scmp.ne.s32.totalorder %s53, %s67
      %p69 = scmp.eq.s32.totalorder %s22, 0
      %p70 = por %p68, %p69
      %s72 = sadd.s32 %s71, 1
      %p75 = scmp.eq.s32.totalorder %s16, 1
      %p76 = scmp.ne.s32.totalorder %s71, %s73
      %p77 = scmp.eq.s32.totalorder %s16, 0
      %p78 = por %p76, %p77
      %p79 = scmp.ne.s32.totalorder %s71, %s73
      %p80 = scmp.eq.s32.totalorder %s21, 1
      %p81 = por %p79, %p80
      %p82 = scmp.ne.s32.totalorder %s73, %s74
      %p83 = scmp.eq.s32.totalorder %s21, 0
      %p84 = por %p82, %p83
      %p85 = scmp.ne.s32.totalorder %s73, %s74
      %p86 = scmp.eq.s32.totalorder %s22, 1
      %p87 = por %p85, %p86
      %p89 = scmp.ne.s32.totalorder %s74, %s88
      %p90 = scmp.eq.s32.totalorder %s22, 0
      %p91 = por %p89, %p90
      %s92 = ssub.s32 %s16, %s23
      %p93 = scmp.eq.s32.totalorder %s92, 0
      %s95 = sadd.s32 %s94, 1
      %s96 = scalar_select %p93, %s94, %s95
      %p99 = pneg %p93
      %p100 = scmp.eq.s32.totalorder %s16, 1
      %p101 = por %p99, %p100
      %p102 = scmp.ne.s32.totalorder %s94, %s97
      %p103 = scmp.eq.s32.totalorder %s16, 0
      %p104 = por %p102, %p103
      %p105 = scmp.ne.s32.totalorder %s94, %s97
      %p106 = scmp.eq.s32.totalorder %s21, 1
      %p107 = por %p105, %p106
      %p108 = scmp.ne.s32.totalorder %s97, %s98
      %p109 = scmp.eq.s32.totalorder %s21, 0
      %p110 = por %p108, %p109
      %p111 = scmp.ne.s32.totalorder %s97, %s98
      %p112 = scmp.eq.s32.totalorder %s22, 1
      %p113 = por %p111, %p112
      %p115 = scmp.ne.s32.totalorder %s98, %s114
      %p116 = scmp.eq.s32.totalorder %s22, 0
      %p117 = por %p115, %p116
      %p118 = scmp.le.s32.totalorder 1, %s16
      %p119 = scmp.lt.s32.totalorder %s16, 3
      %p120 = pnand %p118, %p119
      %p121 = pneg %p120
      // Predicated region
      $region9: #{tpu_custom_call.1} parent=5 // pred_check
        _
      $region10: #{tpu_custom_call.1} parent=5 // pred_check_branch
        %123 = sbr.rel (%p120) target = $region12
      $region11: #{tpu_custom_call.1} parent=5 // pred_region
        %s124 = ssub.s32 %s16, 1
        // Predicated region
        $region13: #{tpu_custom_call.1} parent=11 // pred_check
          %p125 = pneg %p63
        $region14: #{tpu_custom_call.1} parent=11 // pred_check_branch
          %127 = sbr.rel (%p125) target = $region16
        $region15: #{tpu_custom_call.1} parent=11 // pred_region
          %129 = vsyncadd [#allocation6], 0
          %s130 = sshll.u32 %s1, 4
          %s131 = int_to_ptr.hbm [resolvable:$true] %s130
          %s132 = sshll.u32 [#allocation5], 4
          %s133 = int_to_ptr.vmem [resolvable:$true] %s132
          %138 = dma.hbm_to_vmem [thread:$0]  %s131, 1024, %s133, [#allocation6], 64, 64, 4
        $region16: #{tpu_custom_call.1} parent=11 // pred_fallthru
          _
        // Predicated region
        $region17: #{tpu_custom_call.1} parent=11 // pred_check
          %p139 = pneg %p84
        $region18: #{tpu_custom_call.1} parent=11 // pred_check_branch
          %141 = sbr.rel (%p139) target = $region20
        $region19: #{tpu_custom_call.1} parent=11 // pred_region
          _
        $region20: #{tpu_custom_call.1} parent=11 // pred_fallthru
          _
      $region12: #{tpu_custom_call.1} parent=5 // pred_fallthru
        _
      %p142 = scmp.lt.s32.totalorder %s16, 2
      // Predicated region
      $region21: #{tpu_custom_call.1} parent=5 // pred_check
        %p143 = pneg %p142
      $region22: #{tpu_custom_call.1} parent=5 // pred_check_branch
        %145 = sbr.rel (%p143) target = $region24
      $region23: #{tpu_custom_call.1} parent=5 // pred_region
        // Predicated region
        $region25: #{tpu_custom_call.1} parent=23 // pred_check
          %p146 = pneg %p36
        $region26: #{tpu_custom_call.1} parent=23 // pred_check_branch
          %148 = sbr.rel (%p146) target = $region28
        $region27: #{tpu_custom_call.1} parent=23 // pred_region
          %s149 = sand.u32 %s26, 1
          %s150 = scalar_lea.sflag [#allocation3], %s149
          %s151 = sand.u32 %s26, 1
          %s152 = smul.addr %s151, 64
          %s153 = scalar_lea.vmem [#allocation2], %s152
          %155 = vsyncadd %s150, 0
          %s156 = smul.addr %s16, 8
          %s157 = scalar_lea.hbm %s0, %s156
          %s158 = sshll.u32 %s157, 4
          %s159 = int_to_ptr.hbm [resolvable:$true] %s158
          %s160 = sshll.u32 %s153, 4
          %s161 = int_to_ptr.vmem [resolvable:$true] %s160
          %166 = dma.hbm_to_vmem [thread:$0]  %s159, 1024, %s161, %s150, 256, 128, 8
        $region28: #{tpu_custom_call.1} parent=23 // pred_fallthru
          _
      $region24: #{tpu_custom_call.1} parent=5 // pred_fallthru
        _
      %p167 = scmp.le.s32.totalorder 1, %s16
      %p168 = scmp.lt.s32.totalorder %s16, 3
      %p169 = pnand %p167, %p168
      %p170 = pneg %p169
      // Predicated region
      $region29: #{tpu_custom_call.1} parent=5 // pred_check
        _
      $region30: #{tpu_custom_call.1} parent=5 // pred_check_branch
        %172 = sbr.rel (%p169) target = $region32
      $region31: #{tpu_custom_call.1} parent=5 // pred_region
        %s173 = ssub.s32 %s16, 1
        %s174 = sand.u32 %s29, 1
        %s175 = scalar_lea.sflag [#allocation3], %s174
        %s176 = sand.u32 %s29, 1
        %s177 = smul.addr %s176, 64
        %s178 = scalar_lea.vmem [#allocation2], %s177
        // Predicated region
        $region33: #{tpu_custom_call.1} parent=31 // pred_check
          %p179 = pneg %p42
        $region34: #{tpu_custom_call.1} parent=31 // pred_check_branch
          %181 = sbr.rel (%p179) target = $region36
        $region35: #{tpu_custom_call.1} parent=31 // pred_region
          %183 = dma.done %s175, 1024
        $region36: #{tpu_custom_call.1} parent=31 // pred_fallthru
          _
        // Predicated region
        $region37: #{tpu_custom_call.1} parent=31 // pred_check
          %p184 = pneg %p63
        $region38: #{tpu_custom_call.1} parent=31 // pred_check_branch
          %186 = sbr.rel (%p184) target = $region40
        $region39: #{tpu_custom_call.1} parent=31 // pred_region
          %188 = dma.done [#allocation6], 1024
        $region40: #{tpu_custom_call.1} parent=31 // pred_fallthru
          _
        %s189 = sand.u32 %s29, 1
        %s190 = scalar_lea.sflag [#allocation3], %s189
        %s191 = sand.u32 %s29, 1
        %s192 = smul.addr %s191, 64
        %s193 = scalar_lea.vmem [#allocation2], %s192
        %p194 = pneg %p42
        %p195 = pneg %p39
        %p196 = pneg %p63
        %p197 = pneg %p60
        %p198 = pneg %p84
        %p199 = pneg %p81
        %p200 = pneg %p110
        %p201 = pneg %p107
        %s202 = sand.u32 %s97, 1
        %s203 = scalar_lea.sflag [#allocation4], %s202
        %s204 = sand.u32 %s97, 1
        %s205 = smul.addr %s204, 8
        %s206 = scalar_lea.vmem [#allocation7], %s205
        %v207 = vld [vmem:[%s178] sm:$0xff]
        %v208 = vld [vmem:[%s178 + $0x8] sm:$0xff]
        %v209 = vld [vmem:[%s178 + $0x10] sm:$0xff]
        %v210 = vld [vmem:[%s178 + $0x18] sm:$0xff]
        %v211 = vld [vmem:[%s178 + $0x20] sm:$0xff]
        %v212 = vld [vmem:[%s178 + $0x28] sm:$0xff]
        %v213 = vld [vmem:[%s178 + $0x30] sm:$0xff]
        %v214 = vld [vmem:[%s178 + $0x38] sm:$0xff]
        %v215 = vpack.c.bf16 %v208, %v207
        %v216 = vpack.c.bf16 %v210, %v209
        %v217 = vpack.c.bf16 %v212, %v211
        %v218 = vpack.c.bf16 %v214, %v213
        %v219 = vld [vmem:[#allocation5] sm:$0xf]
        %v220 = vld [vmem:[#allocation5 + $0x4] sm:$0xf]
        %v221 = vld [vmem:[#allocation5 + $0x8] sm:$0xf]
        %v222 = vld [vmem:[#allocation5 + $0xc] sm:$0xf]
        %v223 = vld [vmem:[#allocation5 + $0x10] sm:$0xf]
        %v224 = vld [vmem:[#allocation5 + $0x14] sm:$0xf]
        %v225 = vld [vmem:[#allocation5 + $0x18] sm:$0xf]
        %v226 = vld [vmem:[#allocation5 + $0x1c] sm:$0xf]
        %v227 = vld [vmem:[#allocation5 + $0x20] sm:$0xf]
        %v228 = vld [vmem:[#allocation5 + $0x24] sm:$0xf]
        %v229 = vld [vmem:[#allocation5 + $0x28] sm:$0xf]
        %v230 = vld [vmem:[#allocation5 + $0x2c] sm:$0xf]
        %v231 = vld [vmem:[#allocation5 + $0x30] sm:$0xf]
        %v232 = vld [vmem:[#allocation5 + $0x34] sm:$0xf]
        %v233 = vld [vmem:[#allocation5 + $0x38] sm:$0xf]
        %v234 = vld [vmem:[#allocation5 + $0x3c] sm:$0xf]
        %v251 = vunpack.c.l.b16 %v219
        %v252 = vunpack.c.l.b16 %v220
        %v253 = vunpack.c.l.b16 %v221
        %v254 = vunpack.c.l.b16 %v222
        %v255 = vunpack.c.l.b16 %v223
        %v256 = vunpack.c.l.b16 %v224
        %v257 = vunpack.c.l.b16 %v225
        %v258 = vunpack.c.l.b16 %v226
        %v259 = vunpack.c.l.b16 %v227
        %v260 = vunpack.c.l.b16 %v228
        %v261 = vunpack.c.l.b16 %v229
        %v262 = vunpack.c.l.b16 %v230
        %v263 = vunpack.c.l.b16 %v231
        %v264 = vunpack.c.l.b16 %v232
        %v265 = vunpack.c.l.b16 %v233
        %v266 = vunpack.c.l.b16 %v234
        %v267 = vpack.c.b16 %v252, %v251
        %v268 = vpack.c.b16 %v254, %v253
        %v269 = vpack.c.b16 %v256, %v255
        %v270 = vpack.c.b16 %v258, %v257
        %v271 = vpack.c.b16 %v260, %v259
        %v272 = vpack.c.b16 %v262, %v261
        %v273 = vpack.c.b16 %v264, %v263
        %v274 = vpack.c.b16 %v266, %v265
        %283 = vmatpush.bf16.msra.mxu0 %v274
        %284 = vmatpush.bf16.msra.mxu0 %v273
        %285 = vmatpush.bf16.msra.mxu0 %v272
        %286 = vmatpush.bf16.msra.mxu0 %v271
        %287 = vmatpush.bf16.msra.mxu0 %v270
        %288 = vmatpush.bf16.msra.mxu0 %v269
        %289 = vmatpush.bf16.msra.mxu0 %v268
        %290 = vmatpush.bf16.msra.mxu0 %v267
        %291 = vmatmul.bf16.gmra.mxu0 %v215
        %v292 = vpop.f32.mrf.mxu0
        %v293 = vadd.f32 0.0, %v292
        %v294 = vpop.f32.mrf.mxu0
        %v295 = vadd.f32 0.0, %v294
        %296 = vmatmul.bf16.gmra.mxu0 %v216
        %v297 = vpop.f32.mrf.mxu0
        %v298 = vadd.f32 0.0, %v297
        %v299 = vpop.f32.mrf.mxu0
        %v300 = vadd.f32 0.0, %v299
        %301 = vmatmul.bf16.gmra.mxu0 %v217
        %v302 = vpop.f32.mrf.mxu0
        %v303 = vadd.f32 0.0, %v302
        %v304 = vpop.f32.mrf.mxu0
        %v305 = vadd.f32 0.0, %v304
        %306 = vmatmul.bf16.gmra.mxu0 %v218
        %v307 = vpop.f32.mrf.mxu0
        %v308 = vadd.f32 0.0, %v307
        %v309 = vpop.f32.mrf.mxu0
        %v310 = vadd.f32 0.0, %v309
        %311 = vdwg.mxu0
        %v312 = vtanh.pop %v293
        %v313 = vtanh.pop %v295
        %v314 = vtanh.pop %v298
        %v315 = vtanh.pop %v300
        %v316 = vtanh.pop %v303
        %v317 = vtanh.pop %v305
        %v318 = vtanh.pop %v308
        %v319 = vtanh.pop %v310
        %v320 = vld [vmem:[%s2] sm:$0x1]
        %v322 = vperm.slane %v320, 0
        %v324 = vmul.f32 %v312, %v322
        %v325 = vmul.f32 %v313, %v322
        %v326 = vmul.f32 %v314, %v322
        %v327 = vmul.f32 %v315, %v322
        %v328 = vmul.f32 %v316, %v322
        %v329 = vmul.f32 %v317, %v322
        %v330 = vmul.f32 %v318, %v322
        %v331 = vmul.f32 %v319, %v322
        %332 = vadd.xlane.f32.xlu0 %v324
        %v333 = vpop.xlane.xlu0 %332
        %334 = vadd.xlane.f32.xlu0 %v325
        %v335 = vpop.xlane.xlu0 %334
        %336 = vadd.xlane.f32.xlu0 %v326
        %v337 = vpop.xlane.xlu0 %336
        %338 = vadd.xlane.f32.xlu0 %v327
        %v339 = vpop.xlane.xlu0 %338
        %340 = vadd.xlane.f32.xlu0 %v328
        %v341 = vpop.xlane.xlu0 %340
        %342 = vadd.xlane.f32.xlu0 %v329
        %v343 = vpop.xlane.xlu0 %342
        %344 = vadd.xlane.f32.xlu0 %v330
        %v345 = vpop.xlane.xlu0 %344
        %346 = vadd.xlane.f32.xlu0 %v331
        %v347 = vpop.xlane.xlu0 %346
        %v348 = vmax.f32 %v333, %v341
        %v349 = vmax.f32 %v335, %v343
        %v350 = vmax.f32 %v337, %v345
        %v351 = vmax.f32 %v339, %v347
        %v352 = vmax.f32 %v348, %v349
        %v353 = vmax.f32 %v350, %v351
        %v354 = vmax.f32 %v352, %v353
        %v355 = vsub.f32 %v333, %v354
        %v356 = vsub.f32 %v335, %v354
        %v357 = vsub.f32 %v337, %v354
        %v358 = vsub.f32 %v339, %v354
        %v359 = vsub.f32 %v341, %v354
        %v360 = vsub.f32 %v343, %v354
        %v361 = vsub.f32 %v345, %v354
        %v362 = vsub.f32 %v347, %v354
        %v363 = vmul.f32 %v355, 1.442695
        %v364 = vpow.pop %v363
        %v365 = vmul.f32 %v356, 1.442695
        %v366 = vpow.pop %v365
        %v367 = vmul.f32 %v357, 1.442695
        %v368 = vpow.pop %v367
        %v369 = vmul.f32 %v358, 1.442695
        %v370 = vpow.pop %v369
        %v371 = vmul.f32 %v359, 1.442695
        %v372 = vpow.pop %v371
        %v373 = vmul.f32 %v360, 1.442695
        %v374 = vpow.pop %v373
        %v375 = vmul.f32 %v361, 1.442695
        %v376 = vpow.pop %v375
        %v377 = vmul.f32 %v362, 1.442695
        %v378 = vpow.pop %v377
        %v379 = vadd.f32 %v364, %v366
        %v380 = vadd.f32 %v379, %v368
        %v381 = vadd.f32 %v380, %v370
        %v382 = vadd.f32 %v381, %v372
        %v383 = vadd.f32 %v382, %v374
        %v384 = vadd.f32 %v383, %v376
        %v385 = vadd.f32 %v384, %v378
        %v386 = vrcp.pop %v385
        %v387 = vmul.f32 %v364, %v386
        %v388 = vmul.f32 %v366, %v386
        %v389 = vmul.f32 %v368, %v386
        %v390 = vmul.f32 %v370, %v386
        %v391 = vmul.f32 %v372, %v386
        %v392 = vmul.f32 %v374, %v386
        %v393 = vmul.f32 %v376, %v386
        %v394 = vmul.f32 %v378, %v386
        %v395 = vmul.f32 %v387, %v207
        %v396 = vmul.f32 %v388, %v208
        %v397 = vmul.f32 %v389, %v209
        %v398 = vmul.f32 %v390, %v210
        %v399 = vmul.f32 %v391, %v211
        %v400 = vmul.f32 %v392, %v212
        %v401 = vmul.f32 %v393, %v213
        %v402 = vmul.f32 %v394, %v214
        %v403 = vadd.f32 %v395, %v396
        %v404 = vadd.f32 %v403, %v397
        %v405 = vadd.f32 %v404, %v398
        %v406 = vadd.f32 %v405, %v399
        %v407 = vadd.f32 %v406, %v400
        %v408 = vadd.f32 %v407, %v401
        %v409 = vadd.f32 %v408, %v402
        %410 = vst [vmem:[%s206] sm:$0xff] %v409
        %s411 = sand.u32 %s97, 1
        %s412 = scalar_lea.sflag [#allocation4], %s411
        %s413 = sand.u32 %s97, 1
        %s414 = smul.addr %s413, 8
        %s415 = scalar_lea.vmem [#allocation7], %s414
        // Predicated region
        $region41: #{tpu_custom_call.1} parent=31 // pred_check
          %p416 = pneg %p107
        $region42: #{tpu_custom_call.1} parent=31 // pred_check_branch
          %418 = sbr.rel (%p416) target = $region44
        $region43: #{tpu_custom_call.1} parent=31 // pred_region
          %420 = vsyncadd %s412, 0
          %s421 = smul.addr %s21, 8
          %s422 = scalar_lea.hbm %s3, %s421
          %s424 = sshll.u32 %s415, 4
          %s425 = int_to_ptr.vmem [resolvable:$true] %s424
          %s426 = sshll.u32 %s422, 4
          %s427 = int_to_ptr.hbm [resolvable:$true] %s426
          %429 = dma.vmem_to_hbm [thread:$0]  %s425, 128, %s427, %s412
        $region44: #{tpu_custom_call.1} parent=31 // pred_fallthru
          _
      $region32: #{tpu_custom_call.1} parent=5 // pred_fallthru
        _
      %p430 = scmp.le.s32.totalorder 2, %s16
      // Predicated region
      $region45: #{tpu_custom_call.1} parent=5 // pred_check
        %p431 = pneg %p430
      $region46: #{tpu_custom_call.1} parent=5 // pred_check_branch
        %433 = sbr.rel (%p431) target = $region48
      $region47: #{tpu_custom_call.1} parent=5 // pred_region
        %s434 = ssub.s32 %s16, 2
        // Predicated region
        $region49: #{tpu_custom_call.1} parent=47 // pred_check
          %p435 = pneg %p113
        $region50: #{tpu_custom_call.1} parent=47 // pred_check_branch
          %437 = sbr.rel (%p435) target = $region52
        $region51: #{tpu_custom_call.1} parent=47 // pred_region
          %s438 = sand.u32 %s98, 1
          %s439 = scalar_lea.sflag [#allocation4], %s438
          %s440 = sand.u32 %s98, 1
          %s441 = smul.addr %s440, 8
          %s442 = scalar_lea.vmem [#allocation7], %s441
          %444 = dma.done %s439, 128
        $region52: #{tpu_custom_call.1} parent=47 // pred_fallthru
          _
      $region48: #{tpu_custom_call.1} parent=5 // pred_fallthru
        _
    $region6: #{tpu_custom_call.1} parent=1 // loop_footer
      %s20 = sadd.s32 1, %s16
    $region7: #{tpu_custom_call.1} parent=1 // loop_footer_branch
      %15 = sbr.rel target = $region3
    $region8: #{tpu_custom_call.1} parent=1 // loop_exit
      _
    %445 = vsyncpa [#allocation3], 1
    %s446 = scalar_lea.sflag [#allocation3], 1
    %447 = vsyncpa %s446, 1
    %448 = vsyncpa [#allocation6], 1
    %449 = vsyncpa [#allocation4], 1
    %s450 = scalar_lea.sflag [#allocation4], 1
    %451 = vsyncpa %s450, 1

</llo_original>
